<compile_context>
chip_gen: v7x
topology: tpu7x:2x2x1
jax: 0.10.0
libtpu: 0.0.40
codegen_flags: <defaults>
</compile_context>

<pallas_src>
import numpy as np
import jax
import jax.numpy as jnp
from jax import lax
from jax.experimental import pallas as pl
from jax.experimental.pallas import tpu as pltpu


def _make_kernel(TM, H, W, Kc):
    MH = TM * H

    def kernel(t_ref, p_ref, wmain_ref, lwh_ref, wpk_ref, wspec_ref,
               dft_ref, pscale_ref, out_ref):
        t3 = t_ref[...]                      # (TM, H, W) f32
        p3 = p_ref[...]

        # ---- main loss partial: lat-weighted MSE (weights already / (M*H*W))
        diff = t3 - p3
        sq_hw = jnp.sum(diff * diff, axis=0)                     # (H, W)
        main_p = jnp.sum(sq_hw * wmain_ref[...])                 # scalar

        # ---- fused rfft: one wide DFT matmul per tensor (MXU) ---------------
        dftm = dft_ref[...]                  # (W, 2*Kc): [cos | sin] padded
        ft = jnp.dot(t3.reshape(MH, W), dftm,
                     preferred_element_type=jnp.float32)         # (MH, 2Kc)
        fp = jnp.dot(p3.reshape(MH, W), dftm,
                     preferred_element_type=jnp.float32)
        re_t, im_t = ft[:, :Kc], ft[:, Kc:]
        re_p, im_p = fp[:, :Kc], fp[:, Kc:]
        mag_t = (re_t * re_t + im_t * im_t).reshape(TM, H, Kc)   # |FFT|^2
        mag_p = (re_p * re_p + im_p * im_p).reshape(TM, H, Kc)

        # ---- PSDLoss partial (norm='forward'); weights = latw/sum*mask/(M*Kp)
        pscale = pscale_ref[...]             # (1, Kc) = mult / W^2, 0 on pads
        dlog = (jnp.log(mag_t * pscale + 1e-8)
                - jnp.log(mag_p * pscale + 1e-8))                # (TM, H, Kc)
        power_p = jnp.sum(jnp.sum(dlog * dlog, axis=0) * wpk_ref[...])

        # ---- SpectralLoss2D partial; weights = kmask / (M*Kp) ----------------
        lwh = lwh_ref[...]                   # (H, 1) = lat_w / H
        dabs = (jnp.sqrt(mag_p) - jnp.sqrt(mag_t)) * lwh         # (TM, H, Kc)
        d = jnp.sum(dabs, axis=1)                                # (TM, Kc)
        spec_p = jnp.sum(d * d * wspec_ref[...])

        # ---- single unmasked (8,128) tile store of the three partials --------
        lane = lax.broadcasted_iota(jnp.int32, (1, 8, 128), 2)
        out_ref[...] = (jnp.where(lane == 0, main_p, 0.0)
                        + jnp.where(lane == 1, power_p, 0.0)
                        + jnp.where(lane == 2, spec_p, 0.0))

    return kernel


def variable_total_loss_2d(target, pred, lat_w, *, wavenum_init=2,
                           spectral_lambda_reg=0.1, tm=None):
    """target, pred: [B, C, H, W]; lat_w: [H] (cos(lat)/mean(cos(lat)))."""
    B, C, H, W = target.shape
    M = B * C
    K = W // 2 + 1
    Kc = ((K + 127) // 128) * 128            # lane-aligned rfft width
    Kp = K - wavenum_init
    assert Kp > 0, "wavenum_init must be < W//2 + 1"

    if tm is None:
        # ~2 MiB streamed block per input: big enough to amortize per-step
        # overhead, small enough that FFT transients + double buffers fit VMEM.
        tm = max(1, min(M, (2 * 1024 * 1024) // (H * W * 4), 256))
    tm = max(1, min(int(tm), M))
    if H % 8 != 0:
        tm = 1                               # keep in-kernel reshapes layout-free
    grid_m = -(-M // tm)                     # cdiv
    Mp = grid_m * tm

    t2 = target.astype(jnp.float32).reshape(M, H, W)
    p2 = pred.astype(jnp.float32).reshape(M, H, W)
    if Mp > M:                               # zero slabs contribute 0 to all terms
        pad = jnp.zeros((Mp - M, H, W), jnp.float32)
        t2 = jnp.concatenate([t2, pad], axis=0)
        p2 = jnp.concatenate([p2, pad], axis=0)

    inv_main = 1.0 / float(M * H * W)
    inv_kp = 1.0 / float(M * Kp)

    lw = lat_w.astype(jnp.float32).reshape(H, 1)
    w_main = lw * inv_main                   # (H, 1): lat_w / (M*H*W)
    lwh = lw * (1.0 / H)                     # (H, 1): lat_w / H

    kmask = np.zeros((1, Kc), np.float32)    # 1 for wavenum_init <= k < K
    kmask[0, wavenum_init:K] = 1.0
    w_spec = jnp.asarray(kmask * inv_kp)                     # (1, Kc)
    w_pk = (lw / jnp.sum(lw)) * jnp.asarray(kmask) * inv_kp  # (H, Kc)

    # DFT matrix for rfft along the last axis, fused [cos | sin], lane-padded.
    n = np.arange(W, dtype=np.float64)[:, None]
    k = np.arange(K, dtype=np.float64)[None, :]
    ang = -2.0 * np.pi * n * k / W
    dft = np.zeros((W, 2 * Kc), np.float32)
    dft[:, :K] = np.cos(ang)
    dft[:, Kc:Kc + K] = np.sin(ang)
    dft = jnp.asarray(dft)

    psd_scale = np.zeros((1, Kc), np.float32)        # mult / W^2, 0 on pads
    psd_scale[0, :K] = 2.0 / float(W * W)
    psd_scale[0, 0] = 1.0 / float(W * W)
    psd_scale = jnp.asarray(psd_scale)

    kernel = _make_kernel(tm, H, W, Kc)

    out = pl.pallas_call(
        kernel,
        out_shape=jax.ShapeDtypeStruct((grid_m, 8, 128), jnp.float32),
        grid_spec=pltpu.PrefetchScalarGridSpec(
            num_scalar_prefetch=0,
            grid=(grid_m,),
            in_specs=[
                pl.BlockSpec((tm, H, W), lambda m: (m, 0, 0)),     # target slabs
                pl.BlockSpec((tm, H, W), lambda m: (m, 0, 0)),     # pred slabs
                pl.BlockSpec((H, 1), lambda m: (0, 0)),            # w_main
                pl.BlockSpec((H, 1), lambda m: (0, 0)),            # lat_w / H
                pl.BlockSpec((H, Kc), lambda m: (0, 0)),           # w_pk
                pl.BlockSpec((1, Kc), lambda m: (0, 0)),           # w_spec
                pl.BlockSpec((W, 2 * Kc), lambda m: (0, 0)),       # fused DFT
                pl.BlockSpec((1, Kc), lambda m: (0, 0)),           # psd scale
            ],
            out_specs=pl.BlockSpec((1, 8, 128), lambda m: (m, 0, 0)),
        ),
        compiler_params=pltpu.CompilerParams(
            dimension_semantics=("parallel",),      # v7x: shard M across both TCs
            vmem_limit_bytes=48 * 1024 * 1024),
    )(t2, p2, w_main, lwh, w_pk, w_spec, dft, psd_scale)

    comps = jnp.sum(out[:, 0, :], axis=0)            # (128,) lane-parallel partials
    return comps[0] + spectral_lambda_reg * (comps[1] + comps[2])


def reference_loss(target, pred, lat_w, *, wavenum_init=2,
                   spectral_lambda_reg=0.1):
    """Pure-JAX reference mirroring the PyTorch forward."""
    t = target.astype(jnp.float32)
    p = pred.astype(jnp.float32)
    B, C, H, W = t.shape
    K = W // 2 + 1
    lw = lat_w.reshape(1, 1, H, 1)

    # main loss: elementwise MSE * lat weights, mean per var, mean over vars
    main = jnp.mean(((t - p) ** 2) * lw)

    # PSDLoss (norm='forward')
    fk_t = jnp.fft.rfft(t, axis=-1, norm='forward')
    fk_p = jnp.fft.rfft(p, axis=-1, norm='forward')
    mult = jnp.where(jnp.arange(K) == 0, 1.0, 2.0)
    psd_t = (fk_t * jnp.conj(fk_t)).real * mult
    psd_p = (fk_p * jnp.conj(fk_p)).real * mult
    sq = (jnp.log(psd_t + 1e-8)[..., wavenum_init:]
          - jnp.log(psd_p + 1e-8)[..., wavenum_init:]) ** 2
    w = lat_w.reshape(1, 1, H) / lat_w.sum()
    power = jnp.mean(jnp.matmul(w, sq))

    # SpectralLoss2D (unnormalized rfft, abs)
    abs_t = jnp.abs(jnp.fft.rfft(t, axis=-1))
    abs_p = jnp.abs(jnp.fft.rfft(p, axis=-1))
    w2 = lat_w.reshape(1, 1, H)
    mean_t = (jnp.matmul(w2, abs_t) / H)[..., 0, :]
    mean_p = (jnp.matmul(w2, abs_p) / H)[..., 0, :]
    spec = jnp.mean((mean_p[..., wavenum_init:]
                     - mean_t[..., wavenum_init:]) ** 2)

    return main + spectral_lambda_reg * power + spectral_lambda_reg * spec


if __name__ == "__main__":
    def run_case(case_idx, B, C, H, W, tm=None):
        key = jax.random.fold_in(jax.random.PRNGKey(0), case_idx)
        k1, k2 = jax.random.split(key)
        target = jax.random.normal(k1, (B, C, H, W), jnp.float32)
        pred = jax.random.normal(k2, (B, C, H, W), jnp.float32)

        # latitude weights: cos(lat) normalized by its mean (as in __init__)
        lat = np.linspace(-90.0, 90.0, H)
        w_lat = np.cos(np.deg2rad(lat))
        w_lat = w_lat / w_lat.mean()
        lat_w = jnp.asarray(w_lat, jnp.float32)

        out = variable_total_loss_2d(target, pred, lat_w,
                                     wavenum_init=2, spectral_lambda_reg=0.1,
                                     tm=tm)
        out = jax.block_until_ready(out)
        ref = reference_loss(target, pred, lat_w,
                             wavenum_init=2, spectral_lambda_reg=0.1)
        np.testing.assert_allclose(np.asarray(out), np.asarray(ref),
                                   rtol=2e-3, atol=1e-5)

    run_case(0, 2, 4, 16, 16)            # single batched step (TM = M = 8)
    run_case(1, 2, 4, 16, 16, tm=3)      # multi-step + M zero-padding path
    run_case(2, 1, 2, 24, 128)           # lane-wide W, K = 65 (masked lanes)
    print("KERNEL_OK")
</pallas_src>

<mosaic_0001>
module attributes {stable_mosaic.version = 11 : i64} {
  func.func @kernel(%arg0: i32, %arg1: memref<8x16x16xf32, #tpu.memory_space<vmem>>, %arg2: memref<8x16x16xf32, #tpu.memory_space<vmem>>, %arg3: memref<16x1xf32, #tpu.memory_space<vmem>>, %arg4: memref<16x1xf32, #tpu.memory_space<vmem>>, %arg5: memref<16x128xf32, #tpu.memory_space<vmem>>, %arg6: memref<1x128xf32, #tpu.memory_space<vmem>>, %arg7: memref<16x256xf32, #tpu.memory_space<vmem>>, %arg8: memref<1x128xf32, #tpu.memory_space<vmem>>, %arg9: memref<1x8x128xf32, #tpu.memory_space<vmem>>) attributes {dimension_semantics = [#tpu.dimension_semantics<parallel>], iteration_bounds = array<i64: 1>, scalar_prefetch = 0 : i64, scratch_operands = 0 : i64, tpu.core_type = #tpu.core_type<tc>, window_params = [{transform_indices = @transform_0, window_bounds = array<i64: 8, 16, 16>}, {transform_indices = @transform_1, window_bounds = array<i64: 8, 16, 16>}, {pipeline_mode = #tpu.pipeline_mode<synchronous>, transform_indices = @transform_2, window_bounds = array<i64: 16, 1>}, {pipeline_mode = #tpu.pipeline_mode<synchronous>, transform_indices = @transform_3, window_bounds = array<i64: 16, 1>}, {pipeline_mode = #tpu.pipeline_mode<synchronous>, transform_indices = @transform_4, window_bounds = array<i64: 16, 128>}, {pipeline_mode = #tpu.pipeline_mode<synchronous>, transform_indices = @transform_5, window_bounds = array<i64: 1, 128>}, {pipeline_mode = #tpu.pipeline_mode<synchronous>, transform_indices = @transform_6, window_bounds = array<i64: 16, 256>}, {pipeline_mode = #tpu.pipeline_mode<synchronous>, transform_indices = @transform_7, window_bounds = array<i64: 1, 128>}, {transform_indices = @transform_8, window_bounds = array<i64: 1, 8, 128>}]} {
    %c0 = arith.constant 0 : index
    %c0_0 = arith.constant 0 : index
    %c0_1 = arith.constant 0 : index
    %0 = vector.load %arg1[%c0, %c0_0, %c0_1] : memref<8x16x16xf32, #tpu.memory_space<vmem>>, vector<8x16x16xf32>
    %c0_2 = arith.constant 0 : index
    %c0_3 = arith.constant 0 : index
    %c0_4 = arith.constant 0 : index
    %1 = vector.load %arg2[%c0_2, %c0_3, %c0_4] : memref<8x16x16xf32, #tpu.memory_space<vmem>>, vector<8x16x16xf32>
    %2 = arith.subf %0, %1 : vector<8x16x16xf32>
    %3 = arith.mulf %2, %2 : vector<8x16x16xf32>
    %cst = arith.constant dense<0.000000e+00> : vector<16x16xf32>
    %4 = vector.multi_reduction <add>, %3, %cst [0] : vector<8x16x16xf32> to vector<16x16xf32>
    %c0_5 = arith.constant 0 : index
    %c0_6 = arith.constant 0 : index
    %5 = vector.load %arg3[%c0_5, %c0_6] : memref<16x1xf32, #tpu.memory_space<vmem>>, vector<16x1xf32>
    %6 = vector.broadcast %5 : vector<16x1xf32> to vector<16x16xf32>
    %7 = arith.mulf %4, %6 : vector<16x16xf32>
    %8 = vector.shape_cast %7 : vector<16x16xf32> to vector<1x16x16xf32>
    %cst_7 = arith.constant dense<0.000000e+00> : vector<1xf32>
    %9 = vector.multi_reduction <add>, %8, %cst_7 [1, 2] : vector<1x16x16xf32> to vector<1xf32>
    %10 = vector.shape_cast %9 : vector<1xf32> to vector<1x1x1xf32>
    %11 = vector.extract %10[0, 0, 0] : f32 from vector<1x1x1xf32>
    %c0_8 = arith.constant 0 : index
    %c0_9 = arith.constant 0 : index
    %12 = vector.load %arg7[%c0_8, %c0_9] : memref<16x256xf32, #tpu.memory_space<vmem>>, vector<16x256xf32>
    %13 = vector.shape_cast %0 : vector<8x16x16xf32> to vector<128x16xf32>
    %cst_10 = arith.constant dense<0.000000e+00> : vector<128x256xf32>
    %14 = tpu.matmul %13, %12, %cst_10 {dimension_numbers = #tpu.dot_dimension_numbers<[1], [0], [0], [1], [0, 0, 1, 1], [], []>} : vector<128x16xf32>, vector<16x256xf32>, vector<128x256xf32> -> vector<128x256xf32>
    %15 = vector.shape_cast %1 : vector<8x16x16xf32> to vector<128x16xf32>
    %cst_11 = arith.constant dense<0.000000e+00> : vector<128x256xf32>
    %16 = tpu.matmul %15, %12, %cst_11 {dimension_numbers = #tpu.dot_dimension_numbers<[1], [0], [0], [1], [0, 0, 1, 1], [], []>} : vector<128x16xf32>, vector<16x256xf32>, vector<128x256xf32> -> vector<128x256xf32>
    %17 = vector.extract_strided_slice %14 {offsets = [0, 0], sizes = [128, 128], strides = [1, 1]} : vector<128x256xf32> to vector<128x128xf32>
    %18 = vector.extract_strided_slice %14 {offsets = [0, 128], sizes = [128, 128], strides = [1, 1]} : vector<128x256xf32> to vector<128x128xf32>
    %19 = vector.extract_strided_slice %16 {offsets = [0, 0], sizes = [128, 128], strides = [1, 1]} : vector<128x256xf32> to vector<128x128xf32>
    %20 = vector.extract_strided_slice %16 {offsets = [0, 128], sizes = [128, 128], strides = [1, 1]} : vector<128x256xf32> to vector<128x128xf32>
    %21 = arith.mulf %17, %17 : vector<128x128xf32>
    %22 = arith.mulf %18, %18 : vector<128x128xf32>
    %23 = arith.addf %21, %22 : vector<128x128xf32>
    %24 = vector.shape_cast %23 : vector<128x128xf32> to vector<8x16x128xf32>
    %25 = arith.mulf %19, %19 : vector<128x128xf32>
    %26 = arith.mulf %20, %20 : vector<128x128xf32>
    %27 = arith.addf %25, %26 : vector<128x128xf32>
    %28 = vector.shape_cast %27 : vector<128x128xf32> to vector<8x16x128xf32>
    %c0_12 = arith.constant 0 : index
    %c0_13 = arith.constant 0 : index
    %29 = vector.load %arg8[%c0_12, %c0_13] : memref<1x128xf32, #tpu.memory_space<vmem>>, vector<1x128xf32>
    %30 = vector.shape_cast %29 : vector<1x128xf32> to vector<1x1x128xf32>
    %31 = vector.broadcast %30 : vector<1x1x128xf32> to vector<8x16x128xf32>
    %32 = arith.mulf %24, %31 : vector<8x16x128xf32>
    %cst_14 = arith.constant 9.99999993E-9 : f32
    %33 = vector.broadcast %cst_14 : f32 to vector<8x16x128xf32>
    %34 = arith.addf %32, %33 : vector<8x16x128xf32>
    %35 = math.log %34 : vector<8x16x128xf32>
    %36 = vector.shape_cast %29 : vector<1x128xf32> to vector<1x1x128xf32>
    %37 = vector.broadcast %36 : vector<1x1x128xf32> to vector<8x16x128xf32>
    %38 = arith.mulf %28, %37 : vector<8x16x128xf32>
    %cst_15 = arith.constant 9.99999993E-9 : f32
    %39 = vector.broadcast %cst_15 : f32 to vector<8x16x128xf32>
    %40 = arith.addf %38, %39 : vector<8x16x128xf32>
    %41 = math.log %40 : vector<8x16x128xf32>
    %42 = arith.subf %35, %41 : vector<8x16x128xf32>
    %43 = arith.mulf %42, %42 : vector<8x16x128xf32>
    %cst_16 = arith.constant dense<0.000000e+00> : vector<16x128xf32>
    %44 = vector.multi_reduction <add>, %43, %cst_16 [0] : vector<8x16x128xf32> to vector<16x128xf32>
    %c0_17 = arith.constant 0 : index
    %c0_18 = arith.constant 0 : index
    %45 = vector.load %arg5[%c0_17, %c0_18] : memref<16x128xf32, #tpu.memory_space<vmem>>, vector<16x128xf32>
    %46 = arith.mulf %44, %45 : vector<16x128xf32>
    %47 = vector.shape_cast %46 : vector<16x128xf32> to vector<1x16x128xf32>
    %cst_19 = arith.constant dense<0.000000e+00> : vector<1xf32>
    %48 = vector.multi_reduction <add>, %47, %cst_19 [1, 2] : vector<1x16x128xf32> to vector<1xf32>
    %49 = vector.shape_cast %48 : vector<1xf32> to vector<1x1x1xf32>
    %50 = vector.extract %49[0, 0, 0] : f32 from vector<1x1x1xf32>
    %c0_20 = arith.constant 0 : index
    %c0_21 = arith.constant 0 : index
    %51 = vector.load %arg4[%c0_20, %c0_21] : memref<16x1xf32, #tpu.memory_space<vmem>>, vector<16x1xf32>
    %52 = math.sqrt %28 : vector<8x16x128xf32>
    %53 = math.sqrt %24 : vector<8x16x128xf32>
    %54 = arith.subf %52, %53 : vector<8x16x128xf32>
    %55 = vector.shape_cast %51 : vector<16x1xf32> to vector<1x16x1xf32>
    %56 = vector.broadcast %55 : vector<1x16x1xf32> to vector<8x16x128xf32>
    %57 = arith.mulf %54, %56 : vector<8x16x128xf32>
    %cst_22 = arith.constant dense<0.000000e+00> : vector<8x128xf32>
    %58 = vector.multi_reduction <add>, %57, %cst_22 [1] : vector<8x16x128xf32> to vector<8x128xf32>
    %59 = arith.mulf %58, %58 : vector<8x128xf32>
    %c0_23 = arith.constant 0 : index
    %c0_24 = arith.constant 0 : index
    %60 = vector.load %arg6[%c0_23, %c0_24] : memref<1x128xf32, #tpu.memory_space<vmem>>, vector<1x128xf32>
    %61 = vector.broadcast %60 : vector<1x128xf32> to vector<8x128xf32>
    %62 = arith.mulf %59, %61 : vector<8x128xf32>
    %63 = vector.shape_cast %62 : vector<8x128xf32> to vector<1x8x128xf32>
    %cst_25 = arith.constant dense<0.000000e+00> : vector<1xf32>
    %64 = vector.multi_reduction <add>, %63, %cst_25 [1, 2] : vector<1x8x128xf32> to vector<1xf32>
    %65 = vector.shape_cast %64 : vector<1xf32> to vector<1x1x1xf32>
    %66 = vector.extract %65[0, 0, 0] : f32 from vector<1x1x1xf32>
    %67 = tpu.iota {dimensions = array<i32: 2>} : vector<1x8x128xi32>
    %c0_i32 = arith.constant 0 : i32
    %68 = vector.broadcast %c0_i32 : i32 to vector<1x8x128xi32>
    %69 = arith.cmpi eq, %67, %68 : vector<1x8x128xi32>
    %cst_26 = arith.constant 0.000000e+00 : f32
    %70 = vector.broadcast %11 : f32 to vector<1x8x128xf32>
    %71 = vector.broadcast %cst_26 : f32 to vector<1x8x128xf32>
    %72 = arith.select %69, %70, %71 : vector<1x8x128xi1>, vector<1x8x128xf32>
    %c1_i32 = arith.constant 1 : i32
    %73 = vector.broadcast %c1_i32 : i32 to vector<1x8x128xi32>
    %74 = arith.cmpi eq, %67, %73 : vector<1x8x128xi32>
    %cst_27 = arith.constant 0.000000e+00 : f32
    %75 = vector.broadcast %50 : f32 to vector<1x8x128xf32>
    %76 = vector.broadcast %cst_27 : f32 to vector<1x8x128xf32>
    %77 = arith.select %74, %75, %76 : vector<1x8x128xi1>, vector<1x8x128xf32>
    %78 = arith.addf %72, %77 : vector<1x8x128xf32>
    %c2_i32 = arith.constant 2 : i32
    %79 = vector.broadcast %c2_i32 : i32 to vector<1x8x128xi32>
    %80 = arith.cmpi eq, %67, %79 : vector<1x8x128xi32>
    %cst_28 = arith.constant 0.000000e+00 : f32
    %81 = vector.broadcast %66 : f32 to vector<1x8x128xf32>
    %82 = vector.broadcast %cst_28 : f32 to vector<1x8x128xf32>
    %83 = arith.select %80, %81, %82 : vector<1x8x128xi1>, vector<1x8x128xf32>
    %84 = arith.addf %78, %83 : vector<1x8x128xf32>
    %c0_29 = arith.constant 0 : index
    %c0_30 = arith.constant 0 : index
    %c0_31 = arith.constant 0 : index
    %85 = vector.load %arg9[%c0_29, %c0_30, %c0_31] : memref<1x8x128xf32, #tpu.memory_space<vmem>>, vector<1x8x128xf32>
    tpu.vector_store %arg9[%c0_29, %c0_30, %c0_31], %84 {strides = array<i32>} : memref<1x8x128xf32, #tpu.memory_space<vmem>>, vector<1x8x128xf32>,
    return
  }
  func.func @transform_0(%arg0: i32) -> (i32, i32, i32) {
    %c0_i32 = arith.constant 0 : i32
    %c0_i32_0 = arith.constant 0 : i32
    %c0_i32_1 = arith.constant 0 : i32
    return %arg0, %c0_i32, %c0_i32_0 : i32, i32, i32
  }
  func.func @transform_1(%arg0: i32) -> (i32, i32, i32) {
    %c0_i32 = arith.constant 0 : i32
    %c0_i32_0 = arith.constant 0 : i32
    %c0_i32_1 = arith.constant 0 : i32
    return %arg0, %c0_i32, %c0_i32_0 : i32, i32, i32
  }
  func.func @transform_2(%arg0: i32) -> (i32, i32) {
    %c0_i32 = arith.constant 0 : i32
    %c0_i32_0 = arith.constant 0 : i32
    %c0_i32_1 = arith.constant 0 : i32
    return %c0_i32, %c0_i32_0 : i32, i32
  }
  func.func @transform_3(%arg0: i32) -> (i32, i32) {
    %c0_i32 = arith.constant 0 : i32
    %c0_i32_0 = arith.constant 0 : i32
    %c0_i32_1 = arith.constant 0 : i32
    return %c0_i32, %c0_i32_0 : i32, i32
  }
  func.func @transform_4(%arg0: i32) -> (i32, i32) {
    %c0_i32 = arith.constant 0 : i32
    %c0_i32_0 = arith.constant 0 : i32
    %c0_i32_1 = arith.constant 0 : i32
    return %c0_i32, %c0_i32_0 : i32, i32
  }
  func.func @transform_5(%arg0: i32) -> (i32, i32) {
    %c0_i32 = arith.constant 0 : i32
    %c0_i32_0 = arith.constant 0 : i32
    %c0_i32_1 = arith.constant 0 : i32
    return %c0_i32, %c0_i32_0 : i32, i32
  }
  func.func @transform_6(%arg0: i32) -> (i32, i32) {
    %c0_i32 = arith.constant 0 : i32
    %c0_i32_0 = arith.constant 0 : i32
    %c0_i32_1 = arith.constant 0 : i32
    return %c0_i32, %c0_i32_0 : i32, i32
  }
  func.func @transform_7(%arg0: i32) -> (i32, i32) {
    %c0_i32 = arith.constant 0 : i32
    %c0_i32_0 = arith.constant 0 : i32
    %c0_i32_1 = arith.constant 0 : i32
    return %c0_i32, %c0_i32_0 : i32, i32
  }
  func.func @transform_8(%arg0: i32) -> (i32, i32, i32) {
    %c0_i32 = arith.constant 0 : i32
    %c0_i32_0 = arith.constant 0 : i32
    %c0_i32_1 = arith.constant 0 : i32
    return %arg0, %c0_i32, %c0_i32_0 : i32, i32, i32
  }
}

</mosaic_0001>

<llo_original>
// kernel: tpu_custom_call.1
$region0: #{tpu_custom_call.1}
  #allocation0 [shape = 'u32[]', space=smem, size = 0x4, offset = 0x4, fixed_abs, tag = 'smem constant byte address 0x4 - core index']
  #allocation1 [shape = 'u32[144,128]{1,0:T(1,128)}', space=vmem, size = 0x12000, scoped, tag = 'internal scratch']
  %s0 = inlined_call_operand.hbm [shape: f32[8,16,16], index: 0, kind: input, shape index: {}]
  %s1 = inlined_call_operand.hbm [shape: f32[8,16,16], index: 1, kind: input, shape index: {}]
  %s2 = inlined_call_operand.vmem [shape: f32[16,1], index: 2, kind: input, shape index: {}]
  %s3 = inlined_call_operand.vmem [shape: f32[16,1], index: 3, kind: input, shape index: {}]
  %s4 = inlined_call_operand.vmem [shape: f32[16,128], index: 4, kind: input, shape index: {}]
  %s5 = inlined_call_operand.vmem [shape: f32[1,128], index: 5, kind: input, shape index: {}]
  %s6 = inlined_call_operand.vmem [shape: f32[16,256], index: 6, kind: input, shape index: {}]
  %s7 = inlined_call_operand.vmem [shape: f32[1,128], index: 7, kind: input, shape index: {}]
  %s8 = inlined_call_operand.hbm [shape: f32[1,8,128], index: 8, kind: output, shape index: {}]
  %s9 = sld [smem:[#allocation0]]
  $region50: #{tpu_custom_call.1} parent=0
    _
  %s11 = ssub.s32 1, %s9
  %s12 = scalar_select 0, %s11, %s9
  $region1: #{tpu_custom_call.1} parent=0
    #allocation2 [shape = 'u8[65536]{0}', space=vmem, size = 0x10000, scoped, tag = 'input window, operand 0, single buffered']
    #allocation3 [shape = 's32[1]{0}', space=sflag, size = 0x4, scoped, tag = 'scoped memory for tpu_custom_call.1']
    #allocation4 [shape = 's32[1]{0}', space=sflag, size = 0x4, scoped, tag = 'scoped memory for tpu_custom_call.1']
    #allocation5 [shape = 'u8[65536]{0}', space=vmem, size = 0x10000, scoped, tag = 'input window, operand 1, single buffered']
    #allocation6 [shape = 's32[1]{0}', space=sflag, size = 0x4, scoped, tag = 'scoped memory for tpu_custom_call.1']
    #allocation7 [shape = 'u8[4096]{0}', space=vmem, size = 0x1000, scoped, tag = 'output window, operand 0, single buffered']
    %13 = vsyncpa [#allocation3], 0
    %14 = vsyncpa [#allocation6], 0
    %15 = vsyncpa [#allocation4], 0
    // Predicated region
    $region2: #{tpu_custom_call.1} parent=1 // pred_check
      _
    $region3: #{tpu_custom_call.1} parent=1 // pred_check_branch
      %17 = sbr.rel (0) target = $region5
    $region4: #{tpu_custom_call.1} parent=1 // pred_region
      %s19 = ssub.s32 2048, 2048
      %20 = vsyncadd [#allocation3], %s19
      %s21 = sshll.u32 [#allocation2], 4
      %s22 = int_to_ptr.vmem [resolvable:$true] %s21
      %27 = dma.hbm_to_vmem [thread:$0]  %s0, 2048, %s22, [#allocation3], 128, 128, 8
    $region5: #{tpu_custom_call.1} parent=1 // pred_fallthru
      _
    // Predicated region
    $region6: #{tpu_custom_call.1} parent=1 // pred_check
      _
    $region7: #{tpu_custom_call.1} parent=1 // pred_check_branch
      %29 = sbr.rel (0) target = $region9
    $region8: #{tpu_custom_call.1} parent=1 // pred_region
      %s31 = ssub.s32 2048, 2048
      %32 = vsyncadd [#allocation6], %s31
      %s33 = sshll.u32 [#allocation5], 4
      %s34 = int_to_ptr.vmem [resolvable:$true] %s33
      %39 = dma.hbm_to_vmem [thread:$0]  %s1, 2048, %s34, [#allocation6], 128, 128, 8
    $region9: #{tpu_custom_call.1} parent=1 // pred_fallthru
      _
    // Predicated region
    $region10: #{tpu_custom_call.1} parent=1 // pred_check
      _
    $region11: #{tpu_custom_call.1} parent=1 // pred_check_branch
      %41 = sbr.rel (0) target = $region13
    $region12: #{tpu_custom_call.1} parent=1 // pred_region
      _
    $region13: #{tpu_custom_call.1} parent=1 // pred_fallthru
      _
    // Predicated region
    $region14: #{tpu_custom_call.1} parent=1 // pred_check
      _
    $region15: #{tpu_custom_call.1} parent=1 // pred_check_branch
      %43 = sbr.rel (0) target = $region17
    $region16: #{tpu_custom_call.1} parent=1 // pred_region
      _
    $region17: #{tpu_custom_call.1} parent=1 // pred_fallthru
      _
    // Predicated region
    $region18: #{tpu_custom_call.1} parent=1 // pred_check
      _
    $region19: #{tpu_custom_call.1} parent=1 // pred_check_branch
      %45 = sbr.rel (0) target = $region21
    $region20: #{tpu_custom_call.1} parent=1 // pred_region
      _
    $region21: #{tpu_custom_call.1} parent=1 // pred_fallthru
      _
    // Predicated region
    $region22: #{tpu_custom_call.1} parent=1 // pred_check
      _
    $region23: #{tpu_custom_call.1} parent=1 // pred_check_branch
      %47 = sbr.rel (0) target = $region25
    $region24: #{tpu_custom_call.1} parent=1 // pred_region
      _
    $region25: #{tpu_custom_call.1} parent=1 // pred_fallthru
      _
    // Predicated region
    $region26: #{tpu_custom_call.1} parent=1 // pred_check
      _
    $region27: #{tpu_custom_call.1} parent=1 // pred_check_branch
      %49 = sbr.rel (0) target = $region29
    $region28: #{tpu_custom_call.1} parent=1 // pred_region
      _
    $region29: #{tpu_custom_call.1} parent=1 // pred_fallthru
      _
    // Predicated region
    $region30: #{tpu_custom_call.1} parent=1 // pred_check
      _
    $region31: #{tpu_custom_call.1} parent=1 // pred_check_branch
      %51 = sbr.rel (0) target = $region33
    $region32: #{tpu_custom_call.1} parent=1 // pred_region
      _
    $region33: #{tpu_custom_call.1} parent=1 // pred_fallthru
      _
    // Predicated region
    $region34: #{tpu_custom_call.1} parent=1 // pred_check
      _
    $region35: #{tpu_custom_call.1} parent=1 // pred_check_branch
      %53 = sbr.rel (0) target = $region37
    $region36: #{tpu_custom_call.1} parent=1 // pred_region
      %54 = dma.done [#allocation3], 2048
    $region37: #{tpu_custom_call.1} parent=1 // pred_fallthru
      _
    // Predicated region
    $region38: #{tpu_custom_call.1} parent=1 // pred_check
      _
    $region39: #{tpu_custom_call.1} parent=1 // pred_check_branch
      %56 = sbr.rel (0) target = $region41
    $region40: #{tpu_custom_call.1} parent=1 // pred_region
      %57 = dma.done [#allocation6], 2048
    $region41: #{tpu_custom_call.1} parent=1 // pred_fallthru
      _
    %v58 = vld [vmem:[#allocation2] sm:$0xff]
    %v59 = vld [vmem:[#allocation2 + $0x8] sm:$0xff]
    %v60 = vld [vmem:[#allocation2 + $0x10] sm:$0xff]
    %v61 = vld [vmem:[#allocation2 + $0x18] sm:$0xff]
    %v62 = vld [vmem:[#allocation2 + $0x20] sm:$0xff]
    %v63 = vld [vmem:[#allocation2 + $0x28] sm:$0xff]
    %v64 = vld [vmem:[#allocation2 + $0x30] sm:$0xff]
    %v65 = vld [vmem:[#allocation2 + $0x38] sm:$0xff]
    %v66 = vld [vmem:[#allocation2 + $0x40] sm:$0xff]
    %v67 = vld [vmem:[#allocation2 + $0x48] sm:$0xff]
    %v68 = vld [vmem:[#allocation2 + $0x50] sm:$0xff]
    %v69 = vld [vmem:[#allocation2 + $0x58] sm:$0xff]
    %v70 = vld [vmem:[#allocation2 + $0x60] sm:$0xff]
    %v71 = vld [vmem:[#allocation2 + $0x68] sm:$0xff]
    %v72 = vld [vmem:[#allocation2 + $0x70] sm:$0xff]
    %v73 = vld [vmem:[#allocation2 + $0x78] sm:$0xff]
    %v74 = vld [vmem:[#allocation5] sm:$0xff]
    %v75 = vld [vmem:[#allocation5 + $0x8] sm:$0xff]
    %v76 = vld [vmem:[#allocation5 + $0x10] sm:$0xff]
    %v77 = vld [vmem:[#allocation5 + $0x18] sm:$0xff]
    %v78 = vld [vmem:[#allocation5 + $0x20] sm:$0xff]
    %v79 = vld [vmem:[#allocation5 + $0x28] sm:$0xff]
    %v80 = vld [vmem:[#allocation5 + $0x30] sm:$0xff]
    %v81 = vld [vmem:[#allocation5 + $0x38] sm:$0xff]
    %v82 = vld [vmem:[#allocation5 + $0x40] sm:$0xff]
    %v83 = vld [vmem:[#allocation5 + $0x48] sm:$0xff]
    %v84 = vld [vmem:[#allocation5 + $0x50] sm:$0xff]
    %v85 = vld [vmem:[#allocation5 + $0x58] sm:$0xff]
    %v86 = vld [vmem:[#allocation5 + $0x60] sm:$0xff]
    %v87 = vld [vmem:[#allocation5 + $0x68] sm:$0xff]
    %v88 = vld [vmem:[#allocation5 + $0x70] sm:$0xff]
    %v89 = vld [vmem:[#allocation5 + $0x78] sm:$0xff]
    %v90 = vsub.f32 %v58, %v74
    %v91 = vsub.f32 %v59, %v75
    %v92 = vsub.f32 %v60, %v76
    %v93 = vsub.f32 %v61, %v77
    %v94 = vsub.f32 %v62, %v78
    %v95 = vsub.f32 %v63, %v79
    %v96 = vsub.f32 %v64, %v80
    %v97 = vsub.f32 %v65, %v81
    %v98 = vsub.f32 %v66, %v82
    %v99 = vsub.f32 %v67, %v83
    %v100 = vsub.f32 %v68, %v84
    %v101 = vsub.f32 %v69, %v85
    %v102 = vsub.f32 %v70, %v86
    %v103 = vsub.f32 %v71, %v87
    %v104 = vsub.f32 %v72, %v88
    %v105 = vsub.f32 %v73, %v89
    %v106 = vmul.f32 %v90, %v90
    %v107 = vmul.f32 %v91, %v91
    %v108 = vmul.f32 %v92, %v92
    %v109 = vmul.f32 %v93, %v93
    %v110 = vmul.f32 %v94, %v94
    %v111 = vmul.f32 %v95, %v95
    %v112 = vmul.f32 %v96, %v96
    %v113 = vmul.f32 %v97, %v97
    %v114 = vmul.f32 %v98, %v98
    %v115 = vmul.f32 %v99, %v99
    %v116 = vmul.f32 %v100, %v100
    %v117 = vmul.f32 %v101, %v101
    %v118 = vmul.f32 %v102, %v102
    %v119 = vmul.f32 %v103, %v103
    %v120 = vmul.f32 %v104, %v104
    %v121 = vmul.f32 %v105, %v105
    %vm122 = vcmask 130048
    %v123 = vsel %vm122, %v106, 0.0
    %v124 = vsel %vm122, %v108, 0.0
    %v125 = vadd.f32 %v123, %v124
    %v126 = vsel %vm122, %v110, 0.0
    %v127 = vadd.f32 %v125, %v126
    %v128 = vsel %vm122, %v112, 0.0
    %v129 = vadd.f32 %v127, %v128
    %v130 = vsel %vm122, %v114, 0.0
    %v131 = vadd.f32 %v129, %v130
    %v132 = vsel %vm122, %v116, 0.0
    %v133 = vadd.f32 %v131, %v132
    %v134 = vsel %vm122, %v118, 0.0
    %v135 = vadd.f32 %v133, %v134
    %v136 = vsel %vm122, %v120, 0.0
    %v137 = vadd.f32 %v135, %v136
    %v138 = vsel %vm122, %v107, 0.0
    %v139 = vsel %vm122, %v109, 0.0
    %v140 = vadd.f32 %v138, %v139
    %v141 = vsel %vm122, %v111, 0.0
    %v142 = vadd.f32 %v140, %v141
    %v143 = vsel %vm122, %v113, 0.0
    %v144 = vadd.f32 %v142, %v143
    %v145 = vsel %vm122, %v115, 0.0
    %v146 = vadd.f32 %v144, %v145
    %v147 = vsel %vm122, %v117, 0.0
    %v148 = vadd.f32 %v146, %v147
    %v149 = vsel %vm122, %v119, 0.0
    %v150 = vadd.f32 %v148, %v149
    %v151 = vsel %vm122, %v121, 0.0
    %v152 = vadd.f32 %v150, %v151
    %v153 = vld [vmem:[%s2] sm:$0xff]
    %v154 = vld [vmem:[%s2 + $0x8] sm:$0xff]
    %156 = vset.pattern.permute.xlu0 0
    %157 = vperm.xlu0 %156, %v153
    %v158 = vpop.permute.xlu0 %157
    %161 = vset.pattern.permute.xlu0 0
    %162 = vperm.xlu0 %161, %v154
    %v163 = vpop.permute.xlu0 %162
    %v165 = vmul.f32 %v137, %v158
    %v166 = vmul.f32 %v152, %v163
    %v167 = vsel %vm122, %v165, 0.0
    %v168 = vsel %vm122, %v166, 0.0
    %v169 = vadd.f32 %v167, %v168
    %170 = vadd.xlane.f32.xlu0 %v169
    %v171 = vpop.xlane.xlu0 %170
    %v172 = vrot.slane %v171, 4
    %v173 = vadd.f32 %v171, %v172
    %v174 = vrot.slane %v173, 2
    %v175 = vadd.f32 %v173, %v174
    %v176 = vrot.slane %v175, 1
    %v177 = vadd.f32 %v175, %v176
    %s178 = vtos %v177
    %v179 = vld [vmem:[%s6] sm:$0xff]
    %v180 = vld [vmem:[%s6 + $0x8] sm:$0xff]
    %v181 = vld [vmem:[%s6 + $0x10] sm:$0xff]
    %v182 = vld [vmem:[%s6 + $0x18] sm:$0xff]
    %v184 = vsel %vm122, %v58, 0
    %v187 = vsel %vm122, %v59, 0
    %v190 = vsel %vm122, %v60, 0
    %v193 = vsel %vm122, %v61, 0
    %v196 = vsel %vm122, %v62, 0
    %v199 = vsel %vm122, %v63, 0
    %v202 = vsel %vm122, %v64, 0
    %v205 = vsel %vm122, %v65, 0
    %v208 = vsel %vm122, %v66, 0
    %v211 = vsel %vm122, %v67, 0
    %v214 = vsel %vm122, %v68, 0
    %v217 = vsel %vm122, %v69, 0
    %v220 = vsel %vm122, %v70, 0
    %v223 = vsel %vm122, %v71, 0
    %v226 = vsel %vm122, %v72, 0
    %v229 = vsel %vm122, %v73, 0
    %231 = vmatprep.subr.mxu0 %v180
    %232 = vmatpush1.msra.mxu0 %v179
    %233 = vmatprep.subr.mxu0 %v182
    %234 = vmatpush1.msra.mxu0 %v181
    %235 = vmatprep.subr.mxu0 0.0
    %236 = vmatpush1.msra.mxu0 0.0
    %237 = vmatprep.subr.mxu0 0.0
    %238 = vmatpush1.msra.mxu0 0.0
    %239 = vmatprep.subr.mxu0 0.0
    %240 = vmatpush1.msra.mxu0 0.0
    %241 = vmatprep.subr.mxu0 0.0
    %242 = vmatpush1.msra.mxu0 0.0
    %243 = vmatprep.subr.mxu0 0.0
    %244 = vmatpush1.msra.mxu0 0.0
    %245 = vmatprep.subr.mxu0 0.0
    %246 = vmatpush1.msra.mxu0 0.0
    %247 = vmatprep.subr.mxu0 0.0
    %248 = vmatpush1.msra.mxu0 0.0
    %249 = vmatprep.subr.mxu0 0.0
    %250 = vmatpush1.msra.mxu0 0.0
    %251 = vmatprep.subr.mxu0 0.0
    %252 = vmatpush1.msra.mxu0 0.0
    %253 = vmatprep.subr.mxu0 0.0
    %254 = vmatpush1.msra.mxu0 0.0
    %255 = vmatprep.subr.mxu0 0.0
    %256 = vmatpush1.msra.mxu0 0.0
    %257 = vmatprep.subr.mxu0 0.0
    %258 = vmatpush1.msra.mxu0 0.0
    %259 = vmatprep.subr.mxu0 0.0
    %260 = vmatpush1.msra.mxu0 0.0
    %261 = vmatprep.subr.mxu0 0.0
    %262 = vmatpush1.msra.mxu0 0.0
    %263 = vmatprep.subr.mxu0 0.0
    %264 = vmatpush1.msra.mxu0 0.0
    %265 = vmatprep.subr.mxu0 0.0
    %266 = vmatpush1.msra.mxu0 0.0
    %267 = vmatprep.subr.mxu0 0.0
    %268 = vmatpush1.msra.mxu0 0.0
    %269 = vmatprep.subr.mxu0 0.0
    %270 = vmatpush1.msra.mxu0 0.0
    %271 = vmatprep.subr.mxu0 0.0
    %272 = vmatpush1.msra.mxu0 0.0
    %273 = vmatprep.subr.mxu0 0.0
    %274 = vmatpush1.msra.mxu0 0.0
    %275 = vmatprep.subr.mxu0 0.0
    %276 = vmatpush1.msra.mxu0 0.0
    %277 = vmatprep.subr.mxu0 0.0
    %278 = vmatpush1.msra.mxu0 0.0
    %279 = vmatprep.subr.mxu0 0.0
    %280 = vmatpush1.msra.mxu0 0.0
    %281 = vmatprep.subr.mxu0 0.0
    %282 = vmatpush1.msra.mxu0 0.0
    %283 = vmatprep.subr.mxu0 0.0
    %284 = vmatpush1.msra.mxu0 0.0
    %285 = vmatprep.subr.mxu0 0.0
    %286 = vmatpush1.msra.mxu0 0.0
    %287 = vmatprep.subr.mxu0 0.0
    %288 = vmatpush1.msra.mxu0 0.0
    %289 = vmatprep.subr.mxu0 0.0
    %290 = vmatpush1.msra.mxu0 0.0
    %291 = vmatprep.subr.mxu0 0.0
    %292 = vmatpush1.msra.mxu0 0.0
    %293 = vmatprep.subr.mxu0 0.0
    %294 = vmatpush1.msra.mxu0 0.0
    %295 = vmatprep.mubr.f32.mxu0 0.0
    %296 = vmatmul.mubr.f32.gmra.mrb[0].mxu0 %v184
    %v297 = vpop.f32.mrb[0].mxu0
    %v298 = vadd.f32 0.0, %v297
    %v299 = vpop.f32.mrb[0].mxu0
    %v300 = vadd.f32 0.0, %v299
    %301 = vmatprep.mubr.f32.mxu0 0.0
    %302 = vmatmul.mubr.f32.gmra.mrb[0].mxu0 %v187
    %v303 = vpop.f32.mrb[0].mxu0
    %v304 = vadd.f32 0.0, %v303
    %v305 = vpop.f32.mrb[0].mxu0
    %v306 = vadd.f32 0.0, %v305
    %307 = vmatprep.mubr.f32.mxu0 0.0
    %308 = vmatmul.mubr.f32.gmra.mrb[0].mxu0 %v190
    %v309 = vpop.f32.mrb[0].mxu0
    %v310 = vadd.f32 0.0, %v309
    %v311 = vpop.f32.mrb[0].mxu0
    %v312 = vadd.f32 0.0, %v311
    %313 = vmatprep.mubr.f32.mxu0 0.0
    %314 = vmatmul.mubr.f32.gmra.mrb[0].mxu0 %v193
    %v315 = vpop.f32.mrb[0].mxu0
    %v316 = vadd.f32 0.0, %v315
    %v317 = vpop.f32.mrb[0].mxu0
    %v318 = vadd.f32 0.0, %v317
    %319 = vmatprep.mubr.f32.mxu0 0.0
    %320 = vmatmul.mubr.f32.gmra.mrb[0].mxu0 %v196
    %v321 = vpop.f32.mrb[0].mxu0
    %v322 = vadd.f32 0.0, %v321
    %v323 = vpop.f32.mrb[0].mxu0
    %v324 = vadd.f32 0.0, %v323
    %325 = vmatprep.mubr.f32.mxu0 0.0
    %326 = vmatmul.mubr.f32.gmra.mrb[0].mxu0 %v199
    %v327 = vpop.f32.mrb[0].mxu0
    %v328 = vadd.f32 0.0, %v327
    %v329 = vpop.f32.mrb[0].mxu0
    %v330 = vadd.f32 0.0, %v329
    %331 = vmatprep.mubr.f32.mxu0 0.0
    %332 = vmatmul.mubr.f32.gmra.mrb[0].mxu0 %v202
    %v333 = vpop.f32.mrb[0].mxu0
    %v334 = vadd.f32 0.0, %v333
    %v335 = vpop.f32.mrb[0].mxu0
    %v336 = vadd.f32 0.0, %v335
    %337 = vmatprep.mubr.f32.mxu0 0.0
    %338 = vmatmul.mubr.f32.gmra.mrb[0].mxu0 %v205
    %v339 = vpop.f32.mrb[0].mxu0
    %v340 = vadd.f32 0.0, %v339
    %v341 = vpop.f32.mrb[0].mxu0
    %v342 = vadd.f32 0.0, %v341
    %343 = vmatprep.mubr.f32.mxu0 0.0
    %344 = vmatmul.mubr.f32.gmra.mrb[0].mxu0 %v208
    %v345 = vpop.f32.mrb[0].mxu0
    %v346 = vadd.f32 0.0, %v345
    %v347 = vpop.f32.mrb[0].mxu0
    %v348 = vadd.f32 0.0, %v347
    %349 = vmatprep.mubr.f32.mxu0 0.0
    %350 = vmatmul.mubr.f32.gmra.mrb[0].mxu0 %v211
    %v351 = vpop.f32.mrb[0].mxu0
    %v352 = vadd.f32 0.0, %v351
    %v353 = vpop.f32.mrb[0].mxu0
    %v354 = vadd.f32 0.0, %v353
    %355 = vmatprep.mubr.f32.mxu0 0.0
    %356 = vmatmul.mubr.f32.gmra.mrb[0].mxu0 %v214
    %v357 = vpop.f32.mrb[0].mxu0
    %v358 = vadd.f32 0.0, %v357
    %v359 = vpop.f32.mrb[0].mxu0
    %v360 = vadd.f32 0.0, %v359
    %361 = vmatprep.mubr.f32.mxu0 0.0
    %362 = vmatmul.mubr.f32.gmra.mrb[0].mxu0 %v217
    %v363 = vpop.f32.mrb[0].mxu0
    %v364 = vadd.f32 0.0, %v363
    %v365 = vpop.f32.mrb[0].mxu0
    %v366 = vadd.f32 0.0, %v365
    %367 = vmatprep.mubr.f32.mxu0 0.0
    %368 = vmatmul.mubr.f32.gmra.mrb[0].mxu0 %v220
    %v369 = vpop.f32.mrb[0].mxu0
    %v370 = vadd.f32 0.0, %v369
    %v371 = vpop.f32.mrb[0].mxu0
    %v372 = vadd.f32 0.0, %v371
    %373 = vmatprep.mubr.f32.mxu0 0.0
    %374 = vmatmul.mubr.f32.gmra.mrb[0].mxu0 %v223
    %v375 = vpop.f32.mrb[0].mxu0
    %v376 = vadd.f32 0.0, %v375
    %v377 = vpop.f32.mrb[0].mxu0
    %v378 = vadd.f32 0.0, %v377
    %379 = vmatprep.mubr.f32.mxu0 0.0
    %380 = vmatmul.mubr.f32.gmra.mrb[0].mxu0 %v226
    %v381 = vpop.f32.mrb[0].mxu0
    %v382 = vadd.f32 0.0, %v381
    %v383 = vpop.f32.mrb[0].mxu0
    %v384 = vadd.f32 0.0, %v383
    %385 = vmatprep.mubr.f32.mxu0 0.0
    %386 = vmatmul.mubr.f32.gmra.mrb[0].mxu0 %v229
    %v387 = vpop.f32.mrb[0].mxu0
    %v388 = vadd.f32 0.0, %v387
    %v389 = vpop.f32.mrb[0].mxu0
    %v390 = vadd.f32 0.0, %v389
    %391 = vdwg.mxu0
    %v393 = vsel %vm122, %v74, 0
    %v396 = vsel %vm122, %v75, 0
    %v399 = vsel %vm122, %v76, 0
    %v402 = vsel %vm122, %v77, 0
    %v405 = vsel %vm122, %v78, 0
    %v408 = vsel %vm122, %v79, 0
    %v411 = vsel %vm122, %v80, 0
    %v414 = vsel %vm122, %v81, 0
    %v417 = vsel %vm122, %v82, 0
    %v420 = vsel %vm122, %v83, 0
    %v423 = vsel %vm122, %v84, 0
    %v426 = vsel %vm122, %v85, 0
    %v429 = vsel %vm122, %v86, 0
    %v432 = vsel %vm122, %v87, 0
    %v435 = vsel %vm122, %v88, 0
    %v438 = vsel %vm122, %v89, 0
    %440 = vmatprep.subr.mxu0 %v180
    %441 = vmatpush1.msra.mxu0 %v179
    %442 = vmatprep.subr.mxu0 %v182
    %443 = vmatpush1.msra.mxu0 %v181
    %444 = vmatprep.subr.mxu0 0.0
    %445 = vmatpush1.msra.mxu0 0.0
    %446 = vmatprep.subr.mxu0 0.0
    %447 = vmatpush1.msra.mxu0 0.0
    %448 = vmatprep.subr.mxu0 0.0
    %449 = vmatpush1.msra.mxu0 0.0
    %450 = vmatprep.subr.mxu0 0.0
    %451 = vmatpush1.msra.mxu0 0.0
    %452 = vmatprep.subr.mxu0 0.0
    %453 = vmatpush1.msra.mxu0 0.0
    %454 = vmatprep.subr.mxu0 0.0
    %455 = vmatpush1.msra.mxu0 0.0
    %456 = vmatprep.subr.mxu0 0.0
    %457 = vmatpush1.msra.mxu0 0.0
    %458 = vmatprep.subr.mxu0 0.0
    %459 = vmatpush1.msra.mxu0 0.0
    %460 = vmatprep.subr.mxu0 0.0
    %461 = vmatpush1.msra.mxu0 0.0
    %462 = vmatprep.subr.mxu0 0.0
    %463 = vmatpush1.msra.mxu0 0.0
    %464 = vmatprep.subr.mxu0 0.0
    %465 = vmatpush1.msra.mxu0 0.0
    %466 = vmatprep.subr.mxu0 0.0
    %467 = vmatpush1.msra.mxu0 0.0
    %468 = vmatprep.subr.mxu0 0.0
    %469 = vmatpush1.msra.mxu0 0.0
    %470 = vmatprep.subr.mxu0 0.0
    %471 = vmatpush1.msra.mxu0 0.0
    %472 = vmatprep.subr.mxu0 0.0
    %473 = vmatpush1.msra.mxu0 0.0
    %474 = vmatprep.subr.mxu0 0.0
    %475 = vmatpush1.msra.mxu0 0.0
    %476 = vmatprep.subr.mxu0 0.0
    %477 = vmatpush1.msra.mxu0 0.0
    %478 = vmatprep.subr.mxu0 0.0
    %479 = vmatpush1.msra.mxu0 0.0
    %480 = vmatprep.subr.mxu0 0.0
    %481 = vmatpush1.msra.mxu0 0.0
    %482 = vmatprep.subr.mxu0 0.0
    %483 = vmatpush1.msra.mxu0 0.0
    %484 = vmatprep.subr.mxu0 0.0
    %485 = vmatpush1.msra.mxu0 0.0
    %486 = vmatprep.subr.mxu0 0.0
    %487 = vmatpush1.msra.mxu0 0.0
    %488 = vmatprep.subr.mxu0 0.0
    %489 = vmatpush1.msra.mxu0 0.0
    %490 = vmatprep.subr.mxu0 0.0
    %491 = vmatpush1.msra.mxu0 0.0
    %492 = vmatprep.subr.mxu0 0.0
    %493 = vmatpush1.msra.mxu0 0.0
    %494 = vmatprep.subr.mxu0 0.0
    %495 = vmatpush1.msra.mxu0 0.0
    %496 = vmatprep.subr.mxu0 0.0
    %497 = vmatpush1.msra.mxu0 0.0
    %498 = vmatprep.subr.mxu0 0.0
    %499 = vmatpush1.msra.mxu0 0.0
    %500 = vmatprep.subr.mxu0 0.0
    %501 = vmatpush1.msra.mxu0 0.0
    %502 = vmatprep.subr.mxu0 0.0
    %503 = vmatpush1.msra.mxu0 0.0
    %504 = vmatprep.mubr.f32.mxu0 0.0
    %505 = vmatmul.mubr.f32.gmra.mrb[0].mxu0 %v393
    %v506 = vpop.f32.mrb[0].mxu0
    %v507 = vadd.f32 0.0, %v506
    %v508 = vpop.f32.mrb[0].mxu0
    %v509 = vadd.f32 0.0, %v508
    %510 = vmatprep.mubr.f32.mxu0 0.0
    %511 = vmatmul.mubr.f32.gmra.mrb[0].mxu0 %v396
    %v512 = vpop.f32.mrb[0].mxu0
    %v513 = vadd.f32 0.0, %v512
    %v514 = vpop.f32.mrb[0].mxu0
    %v515 = vadd.f32 0.0, %v514
    %516 = vmatprep.mubr.f32.mxu0 0.0
    %517 = vmatmul.mubr.f32.gmra.mrb[0].mxu0 %v399
    %v518 = vpop.f32.mrb[0].mxu0
    %v519 = vadd.f32 0.0, %v518
    %v520 = vpop.f32.mrb[0].mxu0
    %v521 = vadd.f32 0.0, %v520
    %522 = vmatprep.mubr.f32.mxu0 0.0
    %523 = vmatmul.mubr.f32.gmra.mrb[0].mxu0 %v402
    %v524 = vpop.f32.mrb[0].mxu0
    %v525 = vadd.f32 0.0, %v524
    %v526 = vpop.f32.mrb[0].mxu0
    %v527 = vadd.f32 0.0, %v526
    %528 = vmatprep.mubr.f32.mxu0 0.0
    %529 = vmatmul.mubr.f32.gmra.mrb[0].mxu0 %v405
    %v530 = vpop.f32.mrb[0].mxu0
    %v531 = vadd.f32 0.0, %v530
    %v532 = vpop.f32.mrb[0].mxu0
    %v533 = vadd.f32 0.0, %v532
    %534 = vmatprep.mubr.f32.mxu0 0.0
    %535 = vmatmul.mubr.f32.gmra.mrb[0].mxu0 %v408
    %v536 = vpop.f32.mrb[0].mxu0
    %v537 = vadd.f32 0.0, %v536
    %v538 = vpop.f32.mrb[0].mxu0
    %v539 = vadd.f32 0.0, %v538
    %540 = vmatprep.mubr.f32.mxu0 0.0
    %541 = vmatmul.mubr.f32.gmra.mrb[0].mxu0 %v411
    %v542 = vpop.f32.mrb[0].mxu0
    %v543 = vadd.f32 0.0, %v542
    %v544 = vpop.f32.mrb[0].mxu0
    %v545 = vadd.f32 0.0, %v544
    %546 = vmatprep.mubr.f32.mxu0 0.0
    %547 = vmatmul.mubr.f32.gmra.mrb[0].mxu0 %v414
    %v548 = vpop.f32.mrb[0].mxu0
    %v549 = vadd.f32 0.0, %v548
    %v550 = vpop.f32.mrb[0].mxu0
    %v551 = vadd.f32 0.0, %v550
    %552 = vmatprep.mubr.f32.mxu0 0.0
    %553 = vmatmul.mubr.f32.gmra.mrb[0].mxu0 %v417
    %v554 = vpop.f32.mrb[0].mxu0
    %v555 = vadd.f32 0.0, %v554
    %v556 = vpop.f32.mrb[0].mxu0
    %v557 = vadd.f32 0.0, %v556
    %558 = vmatprep.mubr.f32.mxu0 0.0
    %559 = vmatmul.mubr.f32.gmra.mrb[0].mxu0 %v420
    %v560 = vpop.f32.mrb[0].mxu0
    %v561 = vadd.f32 0.0, %v560
    %v562 = vpop.f32.mrb[0].mxu0
    %v563 = vadd.f32 0.0, %v562
    %564 = vmatprep.mubr.f32.mxu0 0.0
    %565 = vmatmul.mubr.f32.gmra.mrb[0].mxu0 %v423
    %v566 = vpop.f32.mrb[0].mxu0
    %v567 = vadd.f32 0.0, %v566
    %v568 = vpop.f32.mrb[0].mxu0
    %v569 = vadd.f32 0.0, %v568
    %570 = vmatprep.mubr.f32.mxu0 0.0
    %571 = vmatmul.mubr.f32.gmra.mrb[0].mxu0 %v426
    %v572 = vpop.f32.mrb[0].mxu0
    %v573 = vadd.f32 0.0, %v572
    %v574 = vpop.f32.mrb[0].mxu0
    %v575 = vadd.f32 0.0, %v574
    %576 = vmatprep.mubr.f32.mxu0 0.0
    %577 = vmatmul.mubr.f32.gmra.mrb[0].mxu0 %v429
    %v578 = vpop.f32.mrb[0].mxu0
    %v579 = vadd.f32 0.0, %v578
    %v580 = vpop.f32.mrb[0].mxu0
    %v581 = vadd.f32 0.0, %v580
    %582 = vmatprep.mubr.f32.mxu0 0.0
    %583 = vmatmul.mubr.f32.gmra.mrb[0].mxu0 %v432
    %v584 = vpop.f32.mrb[0].mxu0
    %v585 = vadd.f32 0.0, %v584
    %v586 = vpop.f32.mrb[0].mxu0
    %v587 = vadd.f32 0.0, %v586
    %588 = vmatprep.mubr.f32.mxu0 0.0
    %589 = vmatmul.mubr.f32.gmra.mrb[0].mxu0 %v435
    %v590 = vpop.f32.mrb[0].mxu0
    %v591 = vadd.f32 0.0, %v590
    %v592 = vpop.f32.mrb[0].mxu0
    %v593 = vadd.f32 0.0, %v592
    %594 = vmatprep.mubr.f32.mxu0 0.0
    %595 = vmatmul.mubr.f32.gmra.mrb[0].mxu0 %v438
    %v596 = vpop.f32.mrb[0].mxu0
    %v597 = vadd.f32 0.0, %v596
    %v598 = vpop.f32.mrb[0].mxu0
    %v599 = vadd.f32 0.0, %v598
    %600 = vdwg.mxu0
    %v601 = vmul.f32 %v298, %v298
    %v602 = vmul.f32 %v304, %v304
    %v603 = vmul.f32 %v310, %v310
    %v604 = vmul.f32 %v316, %v316
    %v605 = vmul.f32 %v322, %v322
    %v606 = vmul.f32 %v328, %v328
    %v607 = vmul.f32 %v334, %v334
    %v608 = vmul.f32 %v340, %v340
    %v609 = vmul.f32 %v346, %v346
    %v610 = vmul.f32 %v352, %v352
    %v611 = vmul.f32 %v358, %v358
    %v612 = vmul.f32 %v364, %v364
    %v613 = vmul.f32 %v370, %v370
    %v614 = vmul.f32 %v376, %v376
    %v615 = vmul.f32 %v382, %v382
    %v616 = vmul.f32 %v388, %v388
    %v617 = vmul.f32 %v300, %v300
    %v618 = vmul.f32 %v306, %v306
    %v619 = vmul.f32 %v312, %v312
    %v620 = vmul.f32 %v318, %v318
    %v621 = vmul.f32 %v324, %v324
    %v622 = vmul.f32 %v330, %v330
    %v623 = vmul.f32 %v336, %v336
    %v624 = vmul.f32 %v342, %v342
    %v625 = vmul.f32 %v348, %v348
    %v626 = vmul.f32 %v354, %v354
    %v627 = vmul.f32 %v360, %v360
    %v628 = vmul.f32 %v366, %v366
    %v629 = vmul.f32 %v372, %v372
    %v630 = vmul.f32 %v378, %v378
    %v631 = vmul.f32 %v384, %v384
    %v632 = vmul.f32 %v390, %v390
    %v633 = vadd.f32 %v601, %v617
    %v634 = vadd.f32 %v602, %v618
    %v635 = vadd.f32 %v603, %v619
    %v636 = vadd.f32 %v604, %v620
    %v637 = vadd.f32 %v605, %v621
    %v638 = vadd.f32 %v606, %v622
    %v639 = vadd.f32 %v607, %v623
    %v640 = vadd.f32 %v608, %v624
    %v641 = vadd.f32 %v609, %v625
    %v642 = vadd.f32 %v610, %v626
    %v643 = vadd.f32 %v611, %v627
    %v644 = vadd.f32 %v612, %v628
    %v645 = vadd.f32 %v613, %v629
    %v646 = vadd.f32 %v614, %v630
    %v647 = vadd.f32 %v615, %v631
    %v648 = vadd.f32 %v616, %v632
    %v649 = vmul.f32 %v507, %v507
    %v650 = vmul.f32 %v513, %v513
    %v651 = vmul.f32 %v519, %v519
    %v652 = vmul.f32 %v525, %v525
    %v653 = vmul.f32 %v531, %v531
    %v654 = vmul.f32 %v537, %v537
    %v655 = vmul.f32 %v543, %v543
    %v656 = vmul.f32 %v549, %v549
    %v657 = vmul.f32 %v555, %v555
    %v658 = vmul.f32 %v561, %v561
    %v659 = vmul.f32 %v567, %v567
    %v660 = vmul.f32 %v573, %v573
    %v661 = vmul.f32 %v579, %v579
    %v662 = vmul.f32 %v585, %v585
    %v663 = vmul.f32 %v591, %v591
    %v664 = vmul.f32 %v597, %v597
    %v665 = vmul.f32 %v509, %v509
    %v666 = vmul.f32 %v515, %v515
    %v667 = vmul.f32 %v521, %v521
    %v668 = vmul.f32 %v527, %v527
    %v669 = vmul.f32 %v533, %v533
    %v670 = vmul.f32 %v539, %v539
    %v671 = vmul.f32 %v545, %v545
    %v672 = vmul.f32 %v551, %v551
    %v673 = vmul.f32 %v557, %v557
    %v674 = vmul.f32 %v563, %v563
    %v675 = vmul.f32 %v569, %v569
    %v676 = vmul.f32 %v575, %v575
    %v677 = vmul.f32 %v581, %v581
    %v678 = vmul.f32 %v587, %v587
    %v679 = vmul.f32 %v593, %v593
    %v680 = vmul.f32 %v599, %v599
    %v681 = vadd.f32 %v649, %v665
    %v682 = vadd.f32 %v650, %v666
    %v683 = vadd.f32 %v651, %v667
    %v684 = vadd.f32 %v652, %v668
    %v685 = vadd.f32 %v653, %v669
    %v686 = vadd.f32 %v654, %v670
    %v687 = vadd.f32 %v655, %v671
    %v688 = vadd.f32 %v656, %v672
    %v689 = vadd.f32 %v657, %v673
    %v690 = vadd.f32 %v658, %v674
    %v691 = vadd.f32 %v659, %v675
    %v692 = vadd.f32 %v660, %v676
    %v693 = vadd.f32 %v661, %v677
    %v694 = vadd.f32 %v662, %v678
    %v695 = vadd.f32 %v663, %v679
    %v696 = vadd.f32 %v664, %v680
    %v697 = vld [vmem:[%s7] sm:$0x1]
    %v699 = vlaneseq
    %v700 = vshrl.u32 %v699, 7
    %v701 = vsub.s32 0, %v700
    %v702 = vrot.slane %v697, %v701
    %v704 = vmul.f32 %v633, %v702
    %v705 = vmul.f32 %v634, %v702
    %v706 = vmul.f32 %v635, %v702
    %v707 = vmul.f32 %v636, %v702
    %v708 = vmul.f32 %v637, %v702
    %v709 = vmul.f32 %v638, %v702
    %v710 = vmul.f32 %v639, %v702
    %v711 = vmul.f32 %v640, %v702
    %v712 = vmul.f32 %v641, %v702
    %v713 = vmul.f32 %v642, %v702
    %v714 = vmul.f32 %v643, %v702
    %v715 = vmul.f32 %v644, %v702
    %v716 = vmul.f32 %v645, %v702
    %v717 = vmul.f32 %v646, %v702
    %v718 = vmul.f32 %v647, %v702
    %v719 = vmul.f32 %v648, %v702
    %v720 = vadd.f32 %v704, 1e-08
    %v721 = vadd.f32 %v705, 1e-08
    %v722 = vadd.f32 %v706, 1e-08
    %v723 = vadd.f32 %v707, 1e-08
    %v724 = vadd.f32 %v708, 1e-08
    %v725 = vadd.f32 %v709, 1e-08
    %v726 = vadd.f32 %v710, 1e-08
    %v727 = vadd.f32 %v711, 1e-08
    %v728 = vadd.f32 %v712, 1e-08
    %v729 = vadd.f32 %v713, 1e-08
    %v730 = vadd.f32 %v714, 1e-08
    %v731 = vadd.f32 %v715, 1e-08
    %v732 = vadd.f32 %v716, 1e-08
    %v733 = vadd.f32 %v717, 1e-08
    %v734 = vadd.f32 %v718, 1e-08
    %v735 = vadd.f32 %v719, 1e-08
    %v736 = vlog2.pop %v720
    %v737 = vmul.f32 %v736, 0.6931472
    %v738 = vlog2.pop %v721
    %v739 = vmul.f32 %v738, 0.6931472
    %v740 = vlog2.pop %v722
    %v741 = vmul.f32 %v740, 0.6931472
    %v742 = vlog2.pop %v723
    %v743 = vmul.f32 %v742, 0.6931472
    %v744 = vlog2.pop %v724
    %v745 = vmul.f32 %v744, 0.6931472
    %v746 = vlog2.pop %v725
    %v747 = vmul.f32 %v746, 0.6931472
    %v748 = vlog2.pop %v726
    %v749 = vmul.f32 %v748, 0.6931472
    %v750 = vlog2.pop %v727
    %v751 = vmul.f32 %v750, 0.6931472
    %v752 = vlog2.pop %v728
    %v753 = vmul.f32 %v752, 0.6931472
    %v754 = vlog2.pop %v729
    %v755 = vmul.f32 %v754, 0.6931472
    %v756 = vlog2.pop %v730
    %v757 = vmul.f32 %v756, 0.6931472
    %v758 = vlog2.pop %v731
    %v759 = vmul.f32 %v758, 0.6931472
    %v760 = vlog2.pop %v732
    %v761 = vmul.f32 %v760, 0.6931472
    %v762 = vlog2.pop %v733
    %v763 = vmul.f32 %v762, 0.6931472
    %v764 = vlog2.pop %v734
    %v765 = vmul.f32 %v764, 0.6931472
    %v766 = vlog2.pop %v735
    %v767 = vmul.f32 %v766, 0.6931472
    %v768 = vmul.f32 %v681, %v702
    %v769 = vmul.f32 %v682, %v702
    %v770 = vmul.f32 %v683, %v702
    %v771 = vmul.f32 %v684, %v702
    %v772 = vmul.f32 %v685, %v702
    %v773 = vmul.f32 %v686, %v702
    %v774 = vmul.f32 %v687, %v702
    %v775 = vmul.f32 %v688, %v702
    %v776 = vmul.f32 %v689, %v702
    %v777 = vmul.f32 %v690, %v702
    %v778 = vmul.f32 %v691, %v702
    %v779 = vmul.f32 %v692, %v702
    %v780 = vmul.f32 %v693, %v702
    %v781 = vmul.f32 %v694, %v702
    %v782 = vmul.f32 %v695, %v702
    %v783 = vmul.f32 %v696, %v702
    %v784 = vadd.f32 %v768, 1e-08
    %v785 = vadd.f32 %v769, 1e-08
    %v786 = vadd.f32 %v770, 1e-08
    %v787 = vadd.f32 %v771, 1e-08
    %v788 = vadd.f32 %v772, 1e-08
    %v789 = vadd.f32 %v773, 1e-08
    %v790 = vadd.f32 %v774, 1e-08
    %v791 = vadd.f32 %v775, 1e-08
    %v792 = vadd.f32 %v776, 1e-08
    %v793 = vadd.f32 %v777, 1e-08
    %v794 = vadd.f32 %v778, 1e-08
    %v795 = vadd.f32 %v779, 1e-08
    %v796 = vadd.f32 %v780, 1e-08
    %v797 = vadd.f32 %v781, 1e-08
    %v798 = vadd.f32 %v782, 1e-08
    %v799 = vadd.f32 %v783, 1e-08
    %v800 = vlog2.pop %v784
    %v801 = vmul.f32 %v800, 0.6931472
    %v802 = vlog2.pop %v785
    %v803 = vmul.f32 %v802, 0.6931472
    %v804 = vlog2.pop %v786
    %v805 = vmul.f32 %v804, 0.6931472
    %v806 = vlog2.pop %v787
    %v807 = vmul.f32 %v806, 0.6931472
    %v808 = vlog2.pop %v788
    %v809 = vmul.f32 %v808, 0.6931472
    %v810 = vlog2.pop %v789
    %v811 = vmul.f32 %v810, 0.6931472
    %v812 = vlog2.pop %v790
    %v813 = vmul.f32 %v812, 0.6931472
    %v814 = vlog2.pop %v791
    %v815 = vmul.f32 %v814, 0.6931472
    %v816 = vlog2.pop %v792
    %v817 = vmul.f32 %v816, 0.6931472
    %v818 = vlog2.pop %v793
    %v819 = vmul.f32 %v818, 0.6931472
    %v820 = vlog2.pop %v794
    %v821 = vmul.f32 %v820, 0.6931472
    %v822 = vlog2.pop %v795
    %v823 = vmul.f32 %v822, 0.6931472
    %v824 = vlog2.pop %v796
    %v825 = vmul.f32 %v824, 0.6931472
    %v826 = vlog2.pop %v797
    %v827 = vmul.f32 %v826, 0.6931472
    %v828 = vlog2.pop %v798
    %v829 = vmul.f32 %v828, 0.6931472
    %v830 = vlog2.pop %v799
    %v831 = vmul.f32 %v830, 0.6931472
    %v832 = vsub.f32 %v737, %v801
    %v833 = vsub.f32 %v739, %v803
    %v834 = vsub.f32 %v741, %v805
    %v835 = vsub.f32 %v743, %v807
    %v836 = vsub.f32 %v745, %v809
    %v837 = vsub.f32 %v747, %v811
    %v838 = vsub.f32 %v749, %v813
    %v839 = vsub.f32 %v751, %v815
    %v840 = vsub.f32 %v753, %v817
    %v841 = vsub.f32 %v755, %v819
    %v842 = vsub.f32 %v757, %v821
    %v843 = vsub.f32 %v759, %v823
    %v844 = vsub.f32 %v761, %v825
    %v845 = vsub.f32 %v763, %v827
    %v846 = vsub.f32 %v765, %v829
    %v847 = vsub.f32 %v767, %v831
    %v848 = vmul.f32 %v832, %v832
    %v849 = vmul.f32 %v833, %v833
    %v850 = vmul.f32 %v834, %v834
    %v851 = vmul.f32 %v835, %v835
    %v852 = vmul.f32 %v836, %v836
    %v853 = vmul.f32 %v837, %v837
    %v854 = vmul.f32 %v838, %v838
    %v855 = vmul.f32 %v839, %v839
    %v856 = vmul.f32 %v840, %v840
    %v857 = vmul.f32 %v841, %v841
    %v858 = vmul.f32 %v842, %v842
    %v859 = vmul.f32 %v843, %v843
    %v860 = vmul.f32 %v844, %v844
    %v861 = vmul.f32 %v845, %v845
    %v862 = vmul.f32 %v846, %v846
    %v863 = vmul.f32 %v847, %v847
    %v864 = vadd.f32 %v848, %v850
    %v865 = vadd.f32 %v864, %v852
    %v866 = vadd.f32 %v865, %v854
    %v867 = vadd.f32 %v866, %v856
    %v868 = vadd.f32 %v867, %v858
    %v869 = vadd.f32 %v868, %v860
    %v870 = vadd.f32 %v869, %v862
    %v871 = vadd.f32 %v849, %v851
    %v872 = vadd.f32 %v871, %v853
    %v873 = vadd.f32 %v872, %v855
    %v874 = vadd.f32 %v873, %v857
    %v875 = vadd.f32 %v874, %v859
    %v876 = vadd.f32 %v875, %v861
    %v877 = vadd.f32 %v876, %v863
    %v878 = vld [vmem:[%s4] sm:$0xff]
    %v879 = vld [vmem:[%s4 + $0x8] sm:$0xff]
    %v880 = vmul.f32 %v870, %v878
    %v881 = vmul.f32 %v877, %v879
    %v882 = vadd.f32 %v880, %v881
    %883 = vadd.xlane.f32.xlu0 %v882
    %v884 = vpop.xlane.xlu0 %883
    %v885 = vrot.slane %v884, 4
    %v886 = vadd.f32 %v884, %v885
    %v887 = vrot.slane %v886, 2
    %v888 = vadd.f32 %v886, %v887
    %v889 = vrot.slane %v888, 1
    %v890 = vadd.f32 %v888, %v889
    %s891 = vtos %v890
    %v892 = vld [vmem:[%s3] sm:$0xff]
    %v893 = vld [vmem:[%s3 + $0x8] sm:$0xff]
    %v894 = vrsqrt.pop %v681
    %v895 = vmul.f32 %v681, %v894
    %vm896 = vcmp.eq.f32.partialorder %v681, inf
    %v897 = vsel %vm896, %v681, %v895
    %vm898 = vcmp.eq.f32.partialorder %v681, 0.0
    %v899 = vand.u32 %v681, 2147483648
    %v900 = vsel %vm898, %v899, %v897
    %v901 = vrsqrt.pop %v682
    %v902 = vmul.f32 %v682, %v901
    %vm903 = vcmp.eq.f32.partialorder %v682, inf
    %v904 = vsel %vm903, %v682, %v902
    %vm905 = vcmp.eq.f32.partialorder %v682, 0.0
    %v906 = vand.u32 %v682, 2147483648
    %v907 = vsel %vm905, %v906, %v904
    %v908 = vrsqrt.pop %v683
    %v909 = vmul.f32 %v683, %v908
    %vm910 = vcmp.eq.f32.partialorder %v683, inf
    %v911 = vsel %vm910, %v683, %v909
    %vm912 = vcmp.eq.f32.partialorder %v683, 0.0
    %v913 = vand.u32 %v683, 2147483648
    %v914 = vsel %vm912, %v913, %v911
    %v915 = vrsqrt.pop %v684
    %v916 = vmul.f32 %v684, %v915
    %vm917 = vcmp.eq.f32.partialorder %v684, inf
    %v918 = vsel %vm917, %v684, %v916
    %vm919 = vcmp.eq.f32.partialorder %v684, 0.0
    %v920 = vand.u32 %v684, 2147483648
    %v921 = vsel %vm919, %v920, %v918
    %v922 = vrsqrt.pop %v685
    %v923 = vmul.f32 %v685, %v922
    %vm924 = vcmp.eq.f32.partialorder %v685, inf
    %v925 = vsel %vm924, %v685, %v923
    %vm926 = vcmp.eq.f32.partialorder %v685, 0.0
    %v927 = vand.u32 %v685, 2147483648
    %v928 = vsel %vm926, %v927, %v925
    %v929 = vrsqrt.pop %v686
    %v930 = vmul.f32 %v686, %v929
    %vm931 = vcmp.eq.f32.partialorder %v686, inf
    %v932 = vsel %vm931, %v686, %v930
    %vm933 = vcmp.eq.f32.partialorder %v686, 0.0
    %v934 = vand.u32 %v686, 2147483648
    %v935 = vsel %vm933, %v934, %v932
    %v936 = vrsqrt.pop %v687
    %v937 = vmul.f32 %v687, %v936
    %vm938 = vcmp.eq.f32.partialorder %v687, inf
    %v939 = vsel %vm938, %v687, %v937
    %vm940 = vcmp.eq.f32.partialorder %v687, 0.0
    %v941 = vand.u32 %v687, 2147483648
    %v942 = vsel %vm940, %v941, %v939
    %v943 = vrsqrt.pop %v688
    %v944 = vmul.f32 %v688, %v943
    %vm945 = vcmp.eq.f32.partialorder %v688, inf
    %v946 = vsel %vm945, %v688, %v944
    %vm947 = vcmp.eq.f32.partialorder %v688, 0.0
    %v948 = vand.u32 %v688, 2147483648
    %v949 = vsel %vm947, %v948, %v946
    %v950 = vrsqrt.pop %v689
    %v951 = vmul.f32 %v689, %v950
    %vm952 = vcmp.eq.f32.partialorder %v689, inf
    %v953 = vsel %vm952, %v689, %v951
    %vm954 = vcmp.eq.f32.partialorder %v689, 0.0
    %v955 = vand.u32 %v689, 2147483648
    %v956 = vsel %vm954, %v955, %v953
    %v957 = vrsqrt.pop %v690
    %v958 = vmul.f32 %v690, %v957
    %vm959 = vcmp.eq.f32.partialorder %v690, inf
    %v960 = vsel %vm959, %v690, %v958
    %vm961 = vcmp.eq.f32.partialorder %v690, 0.0
    %v962 = vand.u32 %v690, 2147483648
    %v963 = vsel %vm961, %v962, %v960
    %v964 = vrsqrt.pop %v691
    %v965 = vmul.f32 %v691, %v964
    %vm966 = vcmp.eq.f32.partialorder %v691, inf
    %v967 = vsel %vm966, %v691, %v965
    %vm968 = vcmp.eq.f32.partialorder %v691, 0.0
    %v969 = vand.u32 %v691, 2147483648
    %v970 = vsel %vm968, %v969, %v967
    %v971 = vrsqrt.pop %v692
    %v972 = vmul.f32 %v692, %v971
    %vm973 = vcmp.eq.f32.partialorder %v692, inf
    %v974 = vsel %vm973, %v692, %v972
    %vm975 = vcmp.eq.f32.partialorder %v692, 0.0
    %v976 = vand.u32 %v692, 2147483648
    %v977 = vsel %vm975, %v976, %v974
    %v978 = vrsqrt.pop %v693
    %v979 = vmul.f32 %v693, %v978
    %vm980 = vcmp.eq.f32.partialorder %v693, inf
    %v981 = vsel %vm980, %v693, %v979
    %vm982 = vcmp.eq.f32.partialorder %v693, 0.0
    %v983 = vand.u32 %v693, 2147483648
    %v984 = vsel %vm982, %v983, %v981
    %v985 = vrsqrt.pop %v694
    %v986 = vmul.f32 %v694, %v985
    %vm987 = vcmp.eq.f32.partialorder %v694, inf
    %v988 = vsel %vm987, %v694, %v986
    %vm989 = vcmp.eq.f32.partialorder %v694, 0.0
    %v990 = vand.u32 %v694, 2147483648
    %v991 = vsel %vm989, %v990, %v988
    %v992 = vrsqrt.pop %v695
    %v993 = vmul.f32 %v695, %v992
    %vm994 = vcmp.eq.f32.partialorder %v695, inf
    %v995 = vsel %vm994, %v695, %v993
    %vm996 = vcmp.eq.f32.partialorder %v695, 0.0
    %v997 = vand.u32 %v695, 2147483648
    %v998 = vsel %vm996, %v997, %v995
    %v999 = vrsqrt.pop %v696
    %v1000 = vmul.f32 %v696, %v999
    %vm1001 = vcmp.eq.f32.partialorder %v696, inf
    %v1002 = vsel %vm1001, %v696, %v1000
    %vm1003 = vcmp.eq.f32.partialorder %v696, 0.0
    %v1004 = vand.u32 %v696, 2147483648
    %v1005 = vsel %vm1003, %v1004, %v1002
    %v1006 = vrsqrt.pop %v633
    %v1007 = vmul.f32 %v633, %v1006
    %vm1008 = vcmp.eq.f32.partialorder %v633, inf
    %v1009 = vsel %vm1008, %v633, %v1007
    %vm1010 = vcmp.eq.f32.partialorder %v633, 0.0
    %v1011 = vand.u32 %v633, 2147483648
    %v1012 = vsel %vm1010, %v1011, %v1009
    %v1013 = vrsqrt.pop %v634
    %v1014 = vmul.f32 %v634, %v1013
    %vm1015 = vcmp.eq.f32.partialorder %v634, inf
    %v1016 = vsel %vm1015, %v634, %v1014
    %vm1017 = vcmp.eq.f32.partialorder %v634, 0.0
    %v1018 = vand.u32 %v634, 2147483648
    %v1019 = vsel %vm1017, %v1018, %v1016
    %v1020 = vrsqrt.pop %v635
    %v1021 = vmul.f32 %v635, %v1020
    %vm1022 = vcmp.eq.f32.partialorder %v635, inf
    %v1023 = vsel %vm1022, %v635, %v1021
    %vm1024 = vcmp.eq.f32.partialorder %v635, 0.0
    %v1025 = vand.u32 %v635, 2147483648
    %v1026 = vsel %vm1024, %v1025, %v1023
    %v1027 = vrsqrt.pop %v636
    %v1028 = vmul.f32 %v636, %v1027
    %vm1029 = vcmp.eq.f32.partialorder %v636, inf
    %v1030 = vsel %vm1029, %v636, %v1028
    %vm1031 = vcmp.eq.f32.partialorder %v636, 0.0
    %v1032 = vand.u32 %v636, 2147483648
    %v1033 = vsel %vm1031, %v1032, %v1030
    %v1034 = vrsqrt.pop %v637
    %v1035 = vmul.f32 %v637, %v1034
    %vm1036 = vcmp.eq.f32.partialorder %v637, inf
    %v1037 = vsel %vm1036, %v637, %v1035
    %vm1038 = vcmp.eq.f32.partialorder %v637, 0.0
    %v1039 = vand.u32 %v637, 2147483648
    %v1040 = vsel %vm1038, %v1039, %v1037
    %v1041 = vrsqrt.pop %v638
    %v1042 = vmul.f32 %v638, %v1041
    %vm1043 = vcmp.eq.f32.partialorder %v638, inf
    %v1044 = vsel %vm1043, %v638, %v1042
    %vm1045 = vcmp.eq.f32.partialorder %v638, 0.0
    %v1046 = vand.u32 %v638, 2147483648
    %v1047 = vsel %vm1045, %v1046, %v1044
    %v1048 = vrsqrt.pop %v639
    %v1049 = vmul.f32 %v639, %v1048
    %vm1050 = vcmp.eq.f32.partialorder %v639, inf
    %v1051 = vsel %vm1050, %v639, %v1049
    %vm1052 = vcmp.eq.f32.partialorder %v639, 0.0
    %v1053 = vand.u32 %v639, 2147483648
    %v1054 = vsel %vm1052, %v1053, %v1051
    %v1055 = vrsqrt.pop %v640
    %v1056 = vmul.f32 %v640, %v1055
    %vm1057 = vcmp.eq.f32.partialorder %v640, inf
    %v1058 = vsel %vm1057, %v640, %v1056
    %vm1059 = vcmp.eq.f32.partialorder %v640, 0.0
    %v1060 = vand.u32 %v640, 2147483648
    %v1061 = vsel %vm1059, %v1060, %v1058
    %v1062 = vrsqrt.pop %v641
    %v1063 = vmul.f32 %v641, %v1062
    %vm1064 = vcmp.eq.f32.partialorder %v641, inf
    %v1065 = vsel %vm1064, %v641, %v1063
    %vm1066 = vcmp.eq.f32.partialorder %v641, 0.0
    %v1067 = vand.u32 %v641, 2147483648
    %v1068 = vsel %vm1066, %v1067, %v1065
    %v1069 = vrsqrt.pop %v642
    %v1070 = vmul.f32 %v642, %v1069
    %vm1071 = vcmp.eq.f32.partialorder %v642, inf
    %v1072 = vsel %vm1071, %v642, %v1070
    %vm1073 = vcmp.eq.f32.partialorder %v642, 0.0
    %v1074 = vand.u32 %v642, 2147483648
    %v1075 = vsel %vm1073, %v1074, %v1072
    %v1076 = vrsqrt.pop %v643
    %v1077 = vmul.f32 %v643, %v1076
    %vm1078 = vcmp.eq.f32.partialorder %v643, inf
    %v1079 = vsel %vm1078, %v643, %v1077
    %vm1080 = vcmp.eq.f32.partialorder %v643, 0.0
    %v1081 = vand.u32 %v643, 2147483648
    %v1082 = vsel %vm1080, %v1081, %v1079
    %v1083 = vrsqrt.pop %v644
    %v1084 = vmul.f32 %v644, %v1083
    %vm1085 = vcmp.eq.f32.partialorder %v644, inf
    %v1086 = vsel %vm1085, %v644, %v1084
    %vm1087 = vcmp.eq.f32.partialorder %v644, 0.0
    %v1088 = vand.u32 %v644, 2147483648
    %v1089 = vsel %vm1087, %v1088, %v1086
    %v1090 = vrsqrt.pop %v645
    %v1091 = vmul.f32 %v645, %v1090
    %vm1092 = vcmp.eq.f32.partialorder %v645, inf
    %v1093 = vsel %vm1092, %v645, %v1091
    %vm1094 = vcmp.eq.f32.partialorder %v645, 0.0
    %v1095 = vand.u32 %v645, 2147483648
    %v1096 = vsel %vm1094, %v1095, %v1093
    %v1097 = vrsqrt.pop %v646
    %v1098 = vmul.f32 %v646, %v1097
    %vm1099 = vcmp.eq.f32.partialorder %v646, inf
    %v1100 = vsel %vm1099, %v646, %v1098
    %vm1101 = vcmp.eq.f32.partialorder %v646, 0.0
    %v1102 = vand.u32 %v646, 2147483648
    %v1103 = vsel %vm1101, %v1102, %v1100
    %v1104 = vrsqrt.pop %v647
    %v1105 = vmul.f32 %v647, %v1104
    %vm1106 = vcmp.eq.f32.partialorder %v647, inf
    %v1107 = vsel %vm1106, %v647, %v1105
    %vm1108 = vcmp.eq.f32.partialorder %v647, 0.0
    %v1109 = vand.u32 %v647, 2147483648
    %v1110 = vsel %vm1108, %v1109, %v1107
    %v1111 = vrsqrt.pop %v648
    %v1112 = vmul.f32 %v648, %v1111
    %vm1113 = vcmp.eq.f32.partialorder %v648, inf
    %v1114 = vsel %vm1113, %v648, %v1112
    %vm1115 = vcmp.eq.f32.partialorder %v648, 0.0
    %v1116 = vand.u32 %v648, 2147483648
    %v1117 = vsel %vm1115, %v1116, %v1114
    %v1118 = vsub.f32 %v900, %v1012
    %v1119 = vsub.f32 %v907, %v1019
    %v1120 = vsub.f32 %v914, %v1026
    %v1121 = vsub.f32 %v921, %v1033
    %v1122 = vsub.f32 %v928, %v1040
    %v1123 = vsub.f32 %v935, %v1047
    %v1124 = vsub.f32 %v942, %v1054
    %v1125 = vsub.f32 %v949, %v1061
    %v1126 = vsub.f32 %v956, %v1068
    %v1127 = vsub.f32 %v963, %v1075
    %v1128 = vsub.f32 %v970, %v1082
    %v1129 = vsub.f32 %v977, %v1089
    %v1130 = vsub.f32 %v984, %v1096
    %v1131 = vsub.f32 %v991, %v1103
    %v1132 = vsub.f32 %v998, %v1110
    %v1133 = vsub.f32 %v1005, %v1117
    %1135 = vset.pattern.permute.xlu0 0
    %1136 = vperm.xlu0 %1135, %v892
    %v1137 = vpop.permute.xlu0 %1136
    %1140 = vset.pattern.permute.xlu0 0
    %1141 = vperm.xlu0 %1140, %v893
    %v1142 = vpop.permute.xlu0 %1141
    %v1144 = vmul.f32 %v1118, %v1137
    %v1145 = vmul.f32 %v1119, %v1142
    %v1146 = vmul.f32 %v1120, %v1137
    %v1147 = vmul.f32 %v1121, %v1142
    %v1148 = vmul.f32 %v1122, %v1137
    %v1149 = vmul.f32 %v1123, %v1142
    %v1150 = vmul.f32 %v1124, %v1137
    %v1151 = vmul.f32 %v1125, %v1142
    %v1152 = vmul.f32 %v1126, %v1137
    %v1153 = vmul.f32 %v1127, %v1142
    %v1154 = vmul.f32 %v1128, %v1137
    %v1155 = vmul.f32 %v1129, %v1142
    %v1156 = vmul.f32 %v1130, %v1137
    %v1157 = vmul.f32 %v1131, %v1142
    %v1158 = vmul.f32 %v1132, %v1137
    %v1159 = vmul.f32 %v1133, %v1142
    %v1160 = vadd.f32 %v1144, %v1145
    %v1161 = vrot.slane %v1160, 4
    %v1162 = vadd.f32 %v1160, %v1161
    %v1163 = vrot.slane %v1162, 2
    %v1164 = vadd.f32 %v1162, %v1163
    %v1165 = vrot.slane %v1164, 1
    %v1166 = vadd.f32 %v1164, %v1165
    %v1167 = vadd.f32 %v1146, %v1147
    %v1168 = vrot.slane %v1167, 4
    %v1169 = vadd.f32 %v1167, %v1168
    %v1170 = vrot.slane %v1169, 2
    %v1171 = vadd.f32 %v1169, %v1170
    %v1172 = vrot.slane %v1171, 1
    %v1173 = vadd.f32 %v1171, %v1172
    %v1174 = vadd.f32 %v1148, %v1149
    %v1175 = vrot.slane %v1174, 4
    %v1176 = vadd.f32 %v1174, %v1175
    %v1177 = vrot.slane %v1176, 2
    %v1178 = vadd.f32 %v1176, %v1177
    %v1179 = vrot.slane %v1178, 1
    %v1180 = vadd.f32 %v1178, %v1179
    %v1181 = vadd.f32 %v1150, %v1151
    %v1182 = vrot.slane %v1181, 4
    %v1183 = vadd.f32 %v1181, %v1182
    %v1184 = vrot.slane %v1183, 2
    %v1185 = vadd.f32 %v1183, %v1184
    %v1186 = vrot.slane %v1185, 1
    %v1187 = vadd.f32 %v1185, %v1186
    %v1188 = vadd.f32 %v1152, %v1153
    %v1189 = vrot.slane %v1188, 4
    %v1190 = vadd.f32 %v1188, %v1189
    %v1191 = vrot.slane %v1190, 2
    %v1192 = vadd.f32 %v1190, %v1191
    %v1193 = vrot.slane %v1192, 1
    %v1194 = vadd.f32 %v1192, %v1193
    %v1195 = vadd.f32 %v1154, %v1155
    %v1196 = vrot.slane %v1195, 4
    %v1197 = vadd.f32 %v1195, %v1196
    %v1198 = vrot.slane %v1197, 2
    %v1199 = vadd.f32 %v1197, %v1198
    %v1200 = vrot.slane %v1199, 1
    %v1201 = vadd.f32 %v1199, %v1200
    %v1202 = vadd.f32 %v1156, %v1157
    %v1203 = vrot.slane %v1202, 4
    %v1204 = vadd.f32 %v1202, %v1203
    %v1205 = vrot.slane %v1204, 2
    %v1206 = vadd.f32 %v1204, %v1205
    %v1207 = vrot.slane %v1206, 1
    %v1208 = vadd.f32 %v1206, %v1207
    %v1209 = vadd.f32 %v1158, %v1159
    %v1210 = vrot.slane %v1209, 4
    %v1211 = vadd.f32 %v1209, %v1210
    %v1212 = vrot.slane %v1211, 2
    %v1213 = vadd.f32 %v1211, %v1212
    %v1214 = vrot.slane %v1213, 1
    %v1215 = vadd.f32 %v1213, %v1214
    %v1216 = vmul.f32 %v1166, %v1166
    %v1217 = vmul.f32 %v1173, %v1173
    %v1218 = vmul.f32 %v1180, %v1180
    %v1219 = vmul.f32 %v1187, %v1187
    %v1220 = vmul.f32 %v1194, %v1194
    %v1221 = vmul.f32 %v1201, %v1201
    %v1222 = vmul.f32 %v1208, %v1208
    %v1223 = vmul.f32 %v1215, %v1215
    %v1224 = vld [vmem:[%s5] sm:$0x1]
    %v1226 = vlaneseq
    %v1227 = vshrl.u32 %v1226, 7
    %v1228 = vsub.s32 0, %v1227
    %v1229 = vrot.slane %v1224, %v1228
    %v1231 = vmul.f32 %v1216, %v1229
    %v1232 = vmul.f32 %v1217, %v1229
    %v1233 = vmul.f32 %v1218, %v1229
    %v1234 = vmul.f32 %v1219, %v1229
    %v1235 = vmul.f32 %v1220, %v1229
    %v1236 = vmul.f32 %v1221, %v1229
    %v1237 = vmul.f32 %v1222, %v1229
    %v1238 = vmul.f32 %v1223, %v1229
    %v1247 = vrot.slane %v1232, 7
    %vm1248 = vcmask 1041409
    %v1249 = vsel %vm1248, %v1247, %v1231
    %v1250 = vrot.slane %v1233, 6
    %vm1251 = vcmask 1042434
    %v1252 = vsel %vm1251, %v1250, %v1249
    %v1253 = vrot.slane %v1234, 5
    %vm1254 = vcmask 1043459
    %v1255 = vsel %vm1254, %v1253, %v1252
    %v1256 = vrot.slane %v1235, 4
    %vm1257 = vcmask 1044484
    %v1258 = vsel %vm1257, %v1256, %v1255
    %v1259 = vrot.slane %v1236, 3
    %vm1260 = vcmask 1045509
    %v1261 = vsel %vm1260, %v1259, %v1258
    %v1262 = vrot.slane %v1237, 2
    %vm1263 = vcmask 1046534
    %v1264 = vsel %vm1263, %v1262, %v1261
    %v1265 = vrot.slane %v1238, 1
    %vm1266 = vcmask 1047559
    %v1267 = vsel %vm1266, %v1265, %v1264
    %1269 = vadd.xlane.f32.xlu0 %v1267
    %v1270 = vpop.xlane.xlu0 %1269
    %v1271 = vrot.slane %v1270, 4
    %v1272 = vadd.f32 %v1270, %v1271
    %v1273 = vrot.slane %v1272, 2
    %v1274 = vadd.f32 %v1272, %v1273
    %v1275 = vrot.slane %v1274, 1
    %v1276 = vadd.f32 %v1274, %v1275
    %s1277 = vtos %v1276
    %v1278 = vlaneseq
    %v1279 = vand.u32 %v1278, 127
    %vm1280 = vcmp.eq.s32.totalorder %v1279, 0
    %v1281 = vstv %s178
    %v1282 = vsel %vm1280, %v1281, 0.0
    %vm1283 = vcmp.eq.s32.totalorder %v1279, 1
    %v1284 = vstv %s891
    %v1285 = vsel %vm1283, %v1284, 0.0
    %v1286 = vadd.f32 %v1282, %v1285
    %vm1287 = vcmp.eq.s32.totalorder %v1279, 2
    %v1288 = vstv %s1277
    %v1289 = vsel %vm1287, %v1288, 0.0
    %v1290 = vadd.f32 %v1286, %v1289
    %1291 = vst [vmem:[#allocation7] sm:$0xff] %v1290
    // Predicated region
    $region42: #{tpu_custom_call.1} parent=1 // pred_check
      _
    $region43: #{tpu_custom_call.1} parent=1 // pred_check_branch
      %1293 = sbr.rel (0) target = $region45
    $region44: #{tpu_custom_call.1} parent=1 // pred_region
      %s1295 = ssub.s32 128, 128
      %1296 = vsyncadd [#allocation4], %s1295
      %s1298 = sshll.u32 [#allocation7], 4
      %s1299 = int_to_ptr.vmem [resolvable:$true] %s1298
      %1301 = dma.vmem_to_hbm [thread:$0]  %s1299, 128, %s8, [#allocation4]
    $region45: #{tpu_custom_call.1} parent=1 // pred_fallthru
      _
    // Predicated region
    $region46: #{tpu_custom_call.1} parent=1 // pred_check
      _
    $region47: #{tpu_custom_call.1} parent=1 // pred_check_branch
      %1303 = sbr.rel (0) target = $region49
    $region48: #{tpu_custom_call.1} parent=1 // pred_region
      %1304 = dma.done [#allocation4], 128
    $region49: #{tpu_custom_call.1} parent=1 // pred_fallthru
      _
    %1305 = vsyncpa [#allocation3], 1
    %1306 = vsyncpa [#allocation6], 1
    %1307 = vsyncpa [#allocation4], 1

</llo_original>
